<compile_context>
chip_gen: v7x
topology: tpu7x:2x2x1
jax: 0.10.0
libtpu: 0.0.40
codegen_flags: <defaults>
</compile_context>

<pallas_src>
import functools

import jax
import jax.numpy as jnp
from jax.experimental import pallas as pl
from jax.experimental.pallas import tpu as pltpu

LANES = 128
SUBLANES = 8
ROW_TILE = 4096  # rows per block -> 4096 * 128 * 4B = 2 MiB per f32 input block


def _charbonnier_kernel(x_ref, y_ref, o_ref, *, eps, n_per_split, n_blocks,
                        block_rows, total, need_mask, need_guard):
    c = pl.program_id(0)   # parallel split (both TCs on v7x)
    i = pl.program_id(1)   # reduction steps within the split

    @pl.when(i == 0)
    def _():
        o_ref[...] = jnp.zeros_like(o_ref)

    vb = c * n_per_split + i   # virtual (global) block index

    def accumulate(masked):
        x = x_ref[...].astype(jnp.float32)
        y = y_ref[...].astype(jnp.float32)
        d = x - y
        v = jnp.sqrt(d * d + jnp.float32(eps))
        if masked:
            # Only ever executed for the last block, so the row offset is a
            # trace-time constant: zero out padded / out-of-bounds elements.
            row0 = (n_blocks - 1) * block_rows
            row_idx = jax.lax.broadcasted_iota(jnp.int32, v.shape, 0) + row0
            lane_idx = jax.lax.broadcasted_iota(jnp.int32, v.shape, 1)
            flat_idx = row_idx * LANES + lane_idx
            v = jnp.where(flat_idx < total, v, jnp.float32(0.0))
        # Fold (block_rows, 128) into a vreg-shaped (8, 128) partial sum:
        # pure same-position VPU adds across (8, 128) tiles; the cross-lane
        # reduce happens exactly once in the wrapper.
        o_ref[...] += v.reshape(-1, SUBLANES, LANES).sum(axis=0)

    def dispatch():
        if need_mask:
            is_last = vb == n_blocks - 1
            pl.when(is_last)(lambda: accumulate(True))
            pl.when(jnp.logical_not(is_last))(lambda: accumulate(False))
        else:
            accumulate(False)

    if need_guard:
        # Odd number of blocks split across 2 cores: the overflow iteration
        # re-fetches a clamped (in-bounds) block but must not accumulate it.
        pl.when(vb < n_blocks)(dispatch)
    else:
        dispatch()


def charbonnier_loss(x, y, eps=1e-6):
    """Computes sum(sqrt((x - y)^2 + eps)) exactly like the PyTorch module."""
    assert x.shape == y.shape
    total = int(x.size)

    xf = x.reshape(-1)
    yf = y.reshape(-1)

    # Padding (an HBM copy) is only done when the flat size is not already
    # lane-aligned, or the tensor is small; the pad target keeps rows a
    # multiple of 8 so the in-kernel (rows//8, 8, 128) fold always works.
    if total % LANES == 0 and total >= ROW_TILE * LANES:
        padded_total = total
    else:
        chunk = SUBLANES * LANES
        padded_total = ((total + chunk - 1) // chunk) * chunk
    if padded_total != total:
        pad = padded_total - total
        xf = jnp.pad(xf, (0, pad))
        yf = jnp.pad(yf, (0, pad))

    rows = padded_total // LANES
    x2d = xf.reshape(rows, LANES)
    y2d = yf.reshape(rows, LANES)

    block_rows = min(ROW_TILE, rows)            # multiple of 8, or full dim
    n_blocks = (rows + block_rows - 1) // block_rows
    num_splits = 2 if n_blocks >= 2 else 1      # both TCs on v7x; serial elsewhere
    n_per_split = (n_blocks + num_splits - 1) // num_splits

    # Mask needed when the grid over-covers the true element count (explicit
    # padding or a partial last Pallas block with unspecified contents).
    need_mask = (n_blocks * block_rows * LANES) != total
    need_guard = (n_per_split * num_splits) != n_blocks

    def idx_map(c, i):
        return (jnp.minimum(c * n_per_split + i, n_blocks - 1), 0)

    kernel = functools.partial(
        _charbonnier_kernel, eps=eps, n_per_split=n_per_split,
        n_blocks=n_blocks, block_rows=block_rows, total=total,
        need_mask=need_mask, need_guard=need_guard)

    partials = pl.pallas_call(
        kernel,
        out_shape=jax.ShapeDtypeStruct((num_splits * SUBLANES, LANES), jnp.float32),
        grid=(num_splits, n_per_split),
        in_specs=[
            pl.BlockSpec((block_rows, LANES), idx_map),
            pl.BlockSpec((block_rows, LANES), idx_map),
        ],
        out_specs=pl.BlockSpec((SUBLANES, LANES), lambda c, i: (c, 0)),
        compiler_params=pltpu.CompilerParams(
            dimension_semantics=("parallel", "arbitrary"),
            vmem_limit_bytes=32 * 1024 * 1024,
        ),
    )(x2d, y2d)

    # Single tiny cross-lane reduction (better accuracy than a per-step
    # scalar accumulate).
    return jnp.sum(partials)


if __name__ == "__main__":
    key = jax.random.PRNGKey(0)
    kx, ky = jax.random.split(key)
    # NCHW, matching PyTorch conventions: batch=2, channels=4, spatial=16x16
    x = jax.random.normal(kx, (2, 4, 16, 16), dtype=jnp.float32)
    y = jax.random.normal(ky, (2, 4, 16, 16), dtype=jnp.float32)

    loss = charbonnier_loss(x, y, eps=1e-6)
    jax.block_until_ready(loss)

    # Pure-JAX reference check
    diff = x - y
    ref = jnp.sum(jnp.sqrt(diff * diff + 1e-6))
    assert jnp.allclose(loss, ref, rtol=1e-5, atol=1e-3), (loss, ref)

    print("KERNEL_OK")
</pallas_src>

<mosaic_0001>
module attributes {stable_mosaic.version = 11 : i64} {
  func.func @_charbonnier_kernel(%arg0: i32, %arg1: i32, %arg2: memref<16x128xf32, #tpu.memory_space<vmem>>, %arg3: memref<16x128xf32, #tpu.memory_space<vmem>>, %arg4: memref<8x128xf32, #tpu.memory_space<vmem>>) attributes {dimension_semantics = [#tpu.dimension_semantics<parallel>, #tpu.dimension_semantics<arbitrary>], iteration_bounds = array<i64: 1, 1>, scalar_prefetch = 0 : i64, scratch_operands = 0 : i64, tpu.core_type = #tpu.core_type<tc>, window_params = [{transform_indices = @transform_0, window_bounds = array<i64: 16, 128>}, {transform_indices = @transform_1, window_bounds = array<i64: 16, 128>}, {transform_indices = @transform_2, window_bounds = array<i64: 8, 128>}]} {
    %c0_i32 = arith.constant 0 : i32
    %0 = arith.cmpi eq, %arg1, %c0_i32 : i32
    %1 = arith.extui %0 : i1 to i32
    %c0_i32_0 = arith.constant 0 : i32
    %2 = arith.cmpi ne, %1, %c0_i32_0 : i32
    scf.if %2 {
      %cst_9 = arith.constant 0.000000e+00 : f32
      %15 = vector.broadcast %cst_9 : f32 to vector<8x128xf32>
      %c0_10 = arith.constant 0 : index
      %c0_11 = arith.constant 0 : index
      %16 = vector.load %arg4[%c0_10, %c0_11] : memref<8x128xf32, #tpu.memory_space<vmem>>, vector<8x128xf32>
      tpu.vector_store %arg4[%c0_10, %c0_11], %15 {strides = array<i32>} : memref<8x128xf32, #tpu.memory_space<vmem>>, vector<8x128xf32>,
    } else {
    }
    %c0 = arith.constant 0 : index
    %c0_1 = arith.constant 0 : index
    %3 = vector.load %arg2[%c0, %c0_1] : memref<16x128xf32, #tpu.memory_space<vmem>>, vector<16x128xf32>
    %c0_2 = arith.constant 0 : index
    %c0_3 = arith.constant 0 : index
    %4 = vector.load %arg3[%c0_2, %c0_3] : memref<16x128xf32, #tpu.memory_space<vmem>>, vector<16x128xf32>
    %5 = arith.subf %3, %4 : vector<16x128xf32>
    %6 = arith.mulf %5, %5 : vector<16x128xf32>
    %cst = arith.constant 9.99999997E-7 : f32
    %7 = vector.broadcast %cst : f32 to vector<16x128xf32>
    %8 = arith.addf %6, %7 : vector<16x128xf32>
    %9 = math.sqrt %8 : vector<16x128xf32>
    %c0_4 = arith.constant 0 : index
    %c0_5 = arith.constant 0 : index
    %10 = vector.load %arg4[%c0_4, %c0_5] : memref<8x128xf32, #tpu.memory_space<vmem>>, vector<8x128xf32>
    %11 = vector.shape_cast %9 : vector<16x128xf32> to vector<2x8x128xf32>
    %cst_6 = arith.constant dense<0.000000e+00> : vector<8x128xf32>
    %12 = vector.multi_reduction <add>, %11, %cst_6 [0] : vector<2x8x128xf32> to vector<8x128xf32>
    %13 = arith.addf %10, %12 : vector<8x128xf32>
    %c0_7 = arith.constant 0 : index
    %c0_8 = arith.constant 0 : index
    %14 = vector.load %arg4[%c0_7, %c0_8] : memref<8x128xf32, #tpu.memory_space<vmem>>, vector<8x128xf32>
    tpu.vector_store %arg4[%c0_7, %c0_8], %13 {strides = array<i32>} : memref<8x128xf32, #tpu.memory_space<vmem>>, vector<8x128xf32>,
    return
  }
  func.func @transform_0(%arg0: i32, %arg1: i32) -> (i32, i32) {
    %c1_i32 = arith.constant 1 : i32
    %0 = arith.muli %arg0, %c1_i32 : i32
    %1 = arith.addi %0, %arg1 : i32
    %c0_i32 = arith.constant 0 : i32
    %2 = arith.minsi %1, %c0_i32 : i32
    %c0_i32_0 = arith.constant 0 : i32
    %c0_i32_1 = arith.constant 0 : i32
    return %2, %c0_i32_0 : i32, i32
  }
  func.func @transform_1(%arg0: i32, %arg1: i32) -> (i32, i32) {
    %c1_i32 = arith.constant 1 : i32
    %0 = arith.muli %arg0, %c1_i32 : i32
    %1 = arith.addi %0, %arg1 : i32
    %c0_i32 = arith.constant 0 : i32
    %2 = arith.minsi %1, %c0_i32 : i32
    %c0_i32_0 = arith.constant 0 : i32
    %c0_i32_1 = arith.constant 0 : i32
    return %2, %c0_i32_0 : i32, i32
  }
  func.func @transform_2(%arg0: i32, %arg1: i32) -> (i32, i32) {
    %c0_i32 = arith.constant 0 : i32
    %c0_i32_0 = arith.constant 0 : i32
    return %arg0, %c0_i32 : i32, i32
  }
}

</mosaic_0001>

<llo_original>
// kernel: tpu_custom_call.1
$region0: #{tpu_custom_call.1}
  #allocation0 [shape = 'u32[]', space=smem, size = 0x4, offset = 0x4, fixed_abs, tag = 'smem constant byte address 0x4 - core index']
  #allocation1 [shape = 'u32[144,128]{1,0:T(1,128)}', space=vmem, size = 0x12000, scoped, tag = 'internal scratch']
  %s0 = inlined_call_operand.hbm [shape: f32[16,128], index: 0, kind: input, shape index: {}]
  %s1 = inlined_call_operand.hbm [shape: f32[16,128], index: 1, kind: input, shape index: {}]
  %s2 = inlined_call_operand.hbm [shape: f32[8,128], index: 2, kind: output, shape index: {}]
  %s3 = sld [smem:[#allocation0]]
  $region30: #{tpu_custom_call.1} parent=0
    _
  %s5 = ssub.s32 1, %s3
  %s6 = scalar_select 0, %s5, %s3
  $region1: #{tpu_custom_call.1} parent=0
    #allocation2 [shape = 'u8[8192]{0}', space=vmem, size = 0x2000, scoped, tag = 'input window, operand 0, single buffered']
    #allocation3 [shape = 's32[1]{0}', space=sflag, size = 0x4, scoped, tag = 'scoped memory for tpu_custom_call.1']
    #allocation4 [shape = 's32[1]{0}', space=sflag, size = 0x4, scoped, tag = 'scoped memory for tpu_custom_call.1']
    #allocation5 [shape = 'u8[8192]{0}', space=vmem, size = 0x2000, scoped, tag = 'input window, operand 1, single buffered']
    #allocation6 [shape = 's32[1]{0}', space=sflag, size = 0x4, scoped, tag = 'scoped memory for tpu_custom_call.1']
    #allocation7 [shape = 'u8[4096]{0}', space=vmem, size = 0x1000, scoped, tag = 'output window, operand 0, single buffered']
    %7 = vsyncpa [#allocation3], 0
    %8 = vsyncpa [#allocation6], 0
    %9 = vsyncpa [#allocation4], 0
    // Predicated region
    $region2: #{tpu_custom_call.1} parent=1 // pred_check
      _
    $region3: #{tpu_custom_call.1} parent=1 // pred_check_branch
      %11 = sbr.rel (0) target = $region5
    $region4: #{tpu_custom_call.1} parent=1 // pred_region
      %s12 = sadd.s32 0, 0
      %p13 = scmp.lt.s32.totalorder %s12, 0
      %s14 = scalar_select %p13, %s12, 0
      %s15 = smul.u32 2, %s14
      %s17 = ssub.s32 256, 256
      %18 = vsyncadd [#allocation3], %s17
      %s19 = smul.addr %s15, 128
      %s20 = scalar_lea.hbm %s0, %s19
      %s21 = sshll.u32 [#allocation2], 4
      %s22 = int_to_ptr.vmem [resolvable:$true] %s21
      %27 = dma.hbm_to_vmem [thread:$0]  %s20, 256, %s22, [#allocation3], 128, 128, 8
    $region5: #{tpu_custom_call.1} parent=1 // pred_fallthru
      _
    // Predicated region
    $region6: #{tpu_custom_call.1} parent=1 // pred_check
      _
    $region7: #{tpu_custom_call.1} parent=1 // pred_check_branch
      %29 = sbr.rel (0) target = $region9
    $region8: #{tpu_custom_call.1} parent=1 // pred_region
      %s30 = sadd.s32 0, 0
      %p31 = scmp.lt.s32.totalorder %s30, 0
      %s32 = scalar_select %p31, %s30, 0
      %s33 = smul.u32 2, %s32
      %s35 = ssub.s32 256, 256
      %36 = vsyncadd [#allocation6], %s35
      %s37 = smul.addr %s33, 128
      %s38 = scalar_lea.hbm %s1, %s37
      %s39 = sshll.u32 [#allocation5], 4
      %s40 = int_to_ptr.vmem [resolvable:$true] %s39
      %45 = dma.hbm_to_vmem [thread:$0]  %s38, 256, %s40, [#allocation6], 128, 128, 8
    $region9: #{tpu_custom_call.1} parent=1 // pred_fallthru
      _
    // Predicated region
    $region10: #{tpu_custom_call.1} parent=1 // pred_check
      _
    $region11: #{tpu_custom_call.1} parent=1 // pred_check_branch
      %47 = sbr.rel (0) target = $region13
    $region12: #{tpu_custom_call.1} parent=1 // pred_region
      %48 = dma.done [#allocation3], 256
    $region13: #{tpu_custom_call.1} parent=1 // pred_fallthru
      _
    // Predicated region
    $region14: #{tpu_custom_call.1} parent=1 // pred_check
      _
    $region15: #{tpu_custom_call.1} parent=1 // pred_check_branch
      %50 = sbr.rel (0) target = $region17
    $region16: #{tpu_custom_call.1} parent=1 // pred_region
      %51 = dma.done [#allocation6], 256
    $region17: #{tpu_custom_call.1} parent=1 // pred_fallthru
      _
    %s52 = sadd.s32 0, 0
    %p53 = scmp.lt.s32.totalorder %s52, 0
    %s54 = scalar_select %p53, %s52, 0
    %s55 = smul.u32 2, %s54
    %s56 = sadd.s32 0, 0
    %p57 = scmp.lt.s32.totalorder %s56, 0
    %s58 = scalar_select %p57, %s56, 0
    %s59 = smul.u32 2, %s58
    %p60 = scmp.eq.s32.totalorder 0, 0
    // Predicated region
    $region18: #{tpu_custom_call.1} parent=1 // pred_check
      %p61 = pneg %p60
    $region19: #{tpu_custom_call.1} parent=1 // pred_check_branch
      %63 = sbr.rel (%p61) target = $region21
    $region20: #{tpu_custom_call.1} parent=1 // pred_region
      %64 = vst [vmem:[#allocation7] sm:$0xff] 0.0
    $region21: #{tpu_custom_call.1} parent=1 // pred_fallthru
      _
    %v65 = vld [vmem:[#allocation2] sm:$0xff]
    %v66 = vld [vmem:[#allocation2 + $0x8] sm:$0xff]
    %v67 = vld [vmem:[#allocation5] sm:$0xff]
    %v68 = vld [vmem:[#allocation5 + $0x8] sm:$0xff]
    %v69 = vsub.f32 %v65, %v67
    %v70 = vsub.f32 %v66, %v68
    %v71 = vmul.f32 %v69, %v69
    %v72 = vmul.f32 %v70, %v70
    %v73 = vadd.f32 %v71, 1e-06
    %v74 = vadd.f32 %v72, 1e-06
    %v75 = vrsqrt.pop %v73
    %v76 = vmul.f32 %v73, %v75
    %vm77 = vcmp.eq.f32.partialorder %v73, inf
    %v78 = vsel %vm77, %v73, %v76
    %vm79 = vcmp.eq.f32.partialorder %v73, 0.0
    %v80 = vand.u32 %v73, 2147483648
    %v81 = vsel %vm79, %v80, %v78
    %v82 = vrsqrt.pop %v74
    %v83 = vmul.f32 %v74, %v82
    %vm84 = vcmp.eq.f32.partialorder %v74, inf
    %v85 = vsel %vm84, %v74, %v83
    %vm86 = vcmp.eq.f32.partialorder %v74, 0.0
    %v87 = vand.u32 %v74, 2147483648
    %v88 = vsel %vm86, %v87, %v85
    %v89 = vld [vmem:[#allocation7] sm:$0xff]
    %v90 = vadd.f32 %v81, %v88
    %v91 = vadd.f32 %v89, %v90
    %92 = vst [vmem:[#allocation7] sm:$0xff] %v91
    // Predicated region
    $region22: #{tpu_custom_call.1} parent=1 // pred_check
      _
    $region23: #{tpu_custom_call.1} parent=1 // pred_check_branch
      %94 = sbr.rel (0) target = $region25
    $region24: #{tpu_custom_call.1} parent=1 // pred_region
      %s96 = ssub.s32 128, 128
      %97 = vsyncadd [#allocation4], %s96
      %s99 = sshll.u32 [#allocation7], 4
      %s100 = int_to_ptr.vmem [resolvable:$true] %s99
      %102 = dma.vmem_to_hbm [thread:$0]  %s100, 128, %s2, [#allocation4]
    $region25: #{tpu_custom_call.1} parent=1 // pred_fallthru
      _
    // Predicated region
    $region26: #{tpu_custom_call.1} parent=1 // pred_check
      _
    $region27: #{tpu_custom_call.1} parent=1 // pred_check_branch
      %104 = sbr.rel (0) target = $region29
    $region28: #{tpu_custom_call.1} parent=1 // pred_region
      %105 = dma.done [#allocation4], 128
    $region29: #{tpu_custom_call.1} parent=1 // pred_fallthru
      _
    %106 = vsyncpa [#allocation3], 1
    %107 = vsyncpa [#allocation6], 1
    %108 = vsyncpa [#allocation4], 1

</llo_original>
